<compile_context>
chip_gen: v7x
topology: tpu7x:2x2x1
jax: 0.10.0
libtpu: 0.0.40
codegen_flags: <defaults>
</compile_context>

<pallas_src>
import functools
import math

import jax
import jax.numpy as jnp
from jax.experimental import pallas as pl
from jax.experimental.pallas import tpu as pltpu

VOCAB = 100  # nn.Embedding(100, emb_dim)


def _round_up(x, m):
    return ((x + m - 1) // m) * m


# ----------------------------- fused kernel ---------------------------------

def _decoder_step_kernel(ids_ref,                      # (B, 1)  int32, VMEM
                         emb_ref,                      # (Vp, P) f32,   VMEM
                         h_in_ref, c_in_ref,           # (L, B, P) f32
                         w_ref,                        # (L, P, P) bf16
                         b_ref,                        # (L, 1, P) f32
                         wl_ref, bl_ref,               # (P, Op) bf16 / (1, Op) f32
                         h_out_ref, c_out_ref,         # (L, B, P) f32 (aliased with inputs)
                         out_ref,                      # (B, Op) f32
                         *, num_layers, hidden, x_slot, vocab_pad):
    B = ids_ref.shape[0]
    P = h_in_ref.shape[-1]
    H = hidden

    # ---- embedding gather: exact one-hot row-select on the MXU -------------
    ids = ids_ref[...]                                                  # (B, 1) i32
    vocab_iota = jax.lax.broadcasted_iota(jnp.int32, (B, vocab_pad), 1)
    onehot = jnp.where(vocab_iota == ids, 1.0, 0.0)                     # (B, Vp) f32
    x = jnp.dot(onehot, emb_ref[...],
                preferred_element_type=jnp.float32)                     # (B, P); lanes >= E are 0

    lane = jax.lax.broadcasted_iota(jnp.int32, (B, P), 1)
    keep = lane < H                                                     # valid state lanes

    # ---- unrolled layer stack (single invocation, no grid) ------------------
    for l in range(num_layers):
        h_prev = h_in_ref[l]                                            # (B, P), 0 past lane H
        c_prev = c_in_ref[l]

        # z = [x | h | 0]: h is rotated into lanes [x_slot, x_slot+H); both
        # operands are zero outside their own region, so addition composes them.
        z = x + pltpu.roll(h_prev, shift=x_slot, axis=1)

        # One wide MXU matmul for all four packed gates [i|f|g|o|0].
        gates = (jnp.dot(z.astype(jnp.bfloat16), w_ref[l],
                         preferred_element_type=jnp.float32)
                 + b_ref[l])                                            # (B, P) f32
        sig = jax.nn.sigmoid(gates)
        th = jnp.tanh(gates)
        i_g = sig                                                       # gate i at lanes [0, H)
        f_g = pltpu.roll(sig, shift=P - H, axis=1)                      # gate f -> lanes [0, H)
        g_g = pltpu.roll(th, shift=P - 2 * H, axis=1)                   # gate g -> lanes [0, H)
        o_g = pltpu.roll(sig, shift=P - 3 * H, axis=1)                  # gate o -> lanes [0, H)

        c_new = f_g * c_prev + i_g * g_g
        h_new = o_g * jnp.tanh(c_new)
        c_new = jnp.where(keep, c_new, 0.0)                             # keep pad lanes == 0
        h_new = jnp.where(keep, h_new, 0.0)

        h_out_ref[l, :, :] = h_new
        c_out_ref[l, :, :] = c_new
        x = h_new                                                       # next layer's input

    # ---- fused Linear head (last layer's hidden) -----------------------------
    out_ref[...] = (jnp.dot(x.astype(jnp.bfloat16), wl_ref[...],
                            preferred_element_type=jnp.float32)
                    + bl_ref[...])


# ------------------------------ parameters ----------------------------------

class DecoderParams:
    """Deterministic init mirroring nn.Embedding / nn.LSTM / nn.Linear."""

    def __init__(self, hidden_size, output_size, emb_dim, num_layers, key):
        self.hidden_size = H = hidden_size
        self.output_size = O = output_size
        self.emb_dim = E = emb_dim
        self.num_layers = L = num_layers

        self.Xs = Xs = max(E, H)                          # x-slot width inside z
        self.P = P = _round_up(max(4 * H, Xs + H), 128)   # unified padded lane width
        self.Op = Op = _round_up(O, 128)                  # padded logits width
        self.Vp = Vp = _round_up(VOCAB, 128)              # padded vocab (gather K dim)

        keys = jax.random.split(key, 1 + 4 * L + 2)
        ki = iter(keys)

        # nn.Embedding(100, emb_dim): N(0, 1); keep f32 and pad to (Vp, P).
        emb = jax.random.normal(next(ki), (VOCAB, E), jnp.float32)
        self.embedding = emb                                           # reference copy
        self.emb_pad = jnp.zeros((Vp, P), jnp.float32).at[:VOCAB, :E].set(emb)

        bound = 1.0 / math.sqrt(H)
        self.ref_w_ih_t, self.ref_w_hh_t, self.ref_bias = [], [], []
        w_layers, b_layers = [], []
        for layer in range(L):
            d_in = E if layer == 0 else H
            w_ih = jax.random.uniform(next(ki), (4 * H, d_in), jnp.float32, -bound, bound)
            w_hh = jax.random.uniform(next(ki), (4 * H, H), jnp.float32, -bound, bound)
            b_ih = jax.random.uniform(next(ki), (4 * H,), jnp.float32, -bound, bound)
            b_hh = jax.random.uniform(next(ki), (4 * H,), jnp.float32, -bound, bound)

            w_ih_t = w_ih.T                          # (d_in, 4H), gates packed [i|f|g|o]
            w_hh_t = w_hh.T                          # (H, 4H)
            bias = (b_ih + b_hh).reshape(1, -1)      # (1, 4H)
            self.ref_w_ih_t.append(w_ih_t)
            self.ref_w_hh_t.append(w_hh_t)
            self.ref_bias.append(bias)

            # Compact combined weight: rows [0:d_in) = W_ih^T, rows [Xs:Xs+H) = W_hh^T,
            # columns packed contiguously; all padding rows/columns are zero.
            wc = jnp.zeros((P, P), jnp.float32)
            wc = wc.at[0:d_in, 0:4 * H].set(w_ih_t)
            wc = wc.at[Xs:Xs + H, 0:4 * H].set(w_hh_t)
            w_layers.append(wc)
            b_layers.append(jnp.zeros((1, P), jnp.float32).at[:, :4 * H].set(bias))

        self.w_cat = jnp.stack(w_layers, 0).astype(jnp.bfloat16)       # (L, P, P) bf16
        self.bias = jnp.stack(b_layers, 0)                             # (L, 1, P) f32

        # nn.Linear(hidden_size, output_size)
        w = jax.random.uniform(next(ki), (O, H), jnp.float32, -bound, bound)
        b = jax.random.uniform(next(ki), (O,), jnp.float32, -bound, bound)
        self.ref_lin_w_t = w.T                        # (H, O)
        self.ref_lin_b = b.reshape(1, -1)             # (1, O)
        self.lin_w = (jnp.zeros((P, Op), jnp.float32)
                      .at[:H, :O].set(self.ref_lin_w_t).astype(jnp.bfloat16))
        self.lin_b = jnp.zeros((1, Op), jnp.float32).at[:, :O].set(self.ref_lin_b)


# ------------------------------ forward --------------------------------------

def pad_state(params, hidden, cell):
    """Pad (L, B, H) state to the lane-padded (L, B, P) layout (do this once)."""
    H, P = params.hidden_size, params.P
    pad = ((0, 0), (0, 0), (0, P - H))
    return jnp.pad(hidden, pad), jnp.pad(cell, pad)


def decoder_step(params, input_ids, hidden_p, cell_p):
    """One decode step on lane-padded state.  Returns (logits_padded (B, Op),
    hidden_p, cell_p); the state arrays are updated in place via aliasing."""
    L, B, P = hidden_p.shape
    Op = params.Op
    ids2 = input_ids.reshape(B, 1).astype(jnp.int32)

    kernel = functools.partial(
        _decoder_step_kernel, num_layers=L, hidden=params.hidden_size,
        x_slot=params.Xs, vocab_pad=params.Vp)

    operands = (ids2, params.emb_pad, hidden_p, cell_p,
                params.w_cat, params.bias, params.lin_w, params.lin_b)
    in_bytes = sum(int(a.size) * a.dtype.itemsize for a in operands)
    out_bytes = 2 * int(hidden_p.size) * 4 + B * Op * 4
    vmem_limit = max(4 * 1024 * 1024, 2 * (in_bytes + out_bytes))

    flops = (2 * B * params.Vp * P            # one-hot embedding gather
             + L * 2 * B * P * P              # per-layer fused gate matmul
             + 2 * B * P * Op)                # linear head
    transcendentals = L * 3 * B * P

    vmem = pl.BlockSpec(memory_space=pltpu.MemorySpace.VMEM)

    h_p, c_p, out_p = pl.pallas_call(
        kernel,
        out_shape=(
            jax.ShapeDtypeStruct((L, B, P), jnp.float32),
            jax.ShapeDtypeStruct((L, B, P), jnp.float32),
            jax.ShapeDtypeStruct((B, Op), jnp.float32),
        ),
        in_specs=[vmem] * 8,
        out_specs=(vmem, vmem, vmem),
        input_output_aliases={2: 0, 3: 1},        # hidden_p -> h_out, cell_p -> c_out
        compiler_params=pltpu.CompilerParams(vmem_limit_bytes=vmem_limit),
        cost_estimate=pl.CostEstimate(flops=flops,
                                      transcendentals=transcendentals,
                                      bytes_accessed=in_bytes + out_bytes),
    )(*operands)
    return out_p, h_p, c_p


def decoder_forward(params, input_ids, hidden, cell):
    """PyTorch-interface wrapper (pads / slices exactly once).  For a decode
    loop, keep the state padded and call decoder_step directly instead."""
    hidden_p, cell_p = pad_state(params, hidden, cell)
    out_p, hidden_p, cell_p = decoder_step(params, input_ids, hidden_p, cell_p)
    H, O = params.hidden_size, params.output_size
    return out_p[:, :O], hidden_p[:, :, :H], cell_p[:, :, :H]


# ------------------------------ reference ------------------------------------

def _reference_forward(params, input_ids, hidden, cell):
    """Plain-JAX reference with the same bf16-weight / f32-accumulate recipe."""
    x = params.embedding[input_ids]                  # (B, E) f32
    H = params.hidden_size
    hs, cs = [], []
    layer_in = x
    for layer in range(params.num_layers):
        w_ih_t = params.ref_w_ih_t[layer].astype(jnp.bfloat16)
        w_hh_t = params.ref_w_hh_t[layer].astype(jnp.bfloat16)
        gates = (jnp.dot(layer_in.astype(jnp.bfloat16), w_ih_t,
                         preferred_element_type=jnp.float32)
                 + jnp.dot(hidden[layer].astype(jnp.bfloat16), w_hh_t,
                           preferred_element_type=jnp.float32)
                 + params.ref_bias[layer])
        i = jax.nn.sigmoid(gates[:, :H])
        f = jax.nn.sigmoid(gates[:, H:2 * H])
        g = jnp.tanh(gates[:, 2 * H:3 * H])
        o = jax.nn.sigmoid(gates[:, 3 * H:])
        c_new = f * cell[layer] + i * g
        h_new = o * jnp.tanh(c_new)
        hs.append(h_new)
        cs.append(c_new)
        layer_in = h_new
    out = (jnp.dot(layer_in.astype(jnp.bfloat16),
                   params.ref_lin_w_t.astype(jnp.bfloat16),
                   preferred_element_type=jnp.float32)
           + params.ref_lin_b)
    return out, jnp.stack(hs, 0), jnp.stack(cs, 0)


# --------------------------------- main ---------------------------------------

if __name__ == "__main__":
    batch = 8
    emb_dim = 32
    hidden_size = 32
    output_size = 16
    num_layers = 2
    dropout_p = 0.1  # unused (eval-mode semantics)

    key = jax.random.PRNGKey(0)
    k_param, k_tok, k_h, k_c = jax.random.split(key, 4)

    params = DecoderParams(hidden_size, output_size, emb_dim, num_layers, k_param)

    input_ids = jax.random.randint(k_tok, (batch,), 0, VOCAB, dtype=jnp.int32)
    hidden = jax.random.normal(k_h, (num_layers, batch, hidden_size), jnp.float32)
    cell = jax.random.normal(k_c, (num_layers, batch, hidden_size), jnp.float32)

    out, h_new, c_new = decoder_forward(params, input_ids, hidden, cell)
    jax.block_until_ready((out, h_new, c_new))

    # sanity check vs plain-JAX reference (same bf16 weights -> tight tolerance)
    ref_out, ref_h, ref_c = _reference_forward(params, input_ids, hidden, cell)
    assert out.shape == (batch, output_size)
    assert h_new.shape == (num_layers, batch, hidden_size)
    assert c_new.shape == (num_layers, batch, hidden_size)
    assert jnp.allclose(out, ref_out, atol=2e-3)
    assert jnp.allclose(h_new, ref_h, atol=2e-3)
    assert jnp.allclose(c_new, ref_c, atol=2e-3)

    print("KERNEL_OK")
</pallas_src>

<mosaic_0001>
module attributes {stable_mosaic.version = 11 : i64} {
  func.func @_decoder_step_kernel(%arg0: memref<8x1xi32, #tpu.memory_space<vmem>>, %arg1: memref<128x128xf32, #tpu.memory_space<vmem>>, %arg2: memref<2x8x128xf32, #tpu.memory_space<vmem>>, %arg3: memref<2x8x128xf32, #tpu.memory_space<vmem>>, %arg4: memref<2x128x128xbf16, #tpu.memory_space<vmem>>, %arg5: memref<2x1x128xf32, #tpu.memory_space<vmem>>, %arg6: memref<128x128xbf16, #tpu.memory_space<vmem>>, %arg7: memref<1x128xf32, #tpu.memory_space<vmem>>, %arg8: memref<2x8x128xf32, #tpu.memory_space<vmem>>, %arg9: memref<2x8x128xf32, #tpu.memory_space<vmem>>, %arg10: memref<8x128xf32, #tpu.memory_space<vmem>>) attributes {dimension_semantics = [], scalar_prefetch = 0 : i64, scratch_operands = 0 : i64, tpu.core_type = #tpu.core_type<tc>} {
    %c0 = arith.constant 0 : index
    %c0_0 = arith.constant 0 : index
    %0 = vector.load %arg0[%c0, %c0_0] : memref<8x1xi32, #tpu.memory_space<vmem>>, vector<8x1xi32>
    %1 = tpu.iota {dimensions = array<i32: 1>} : vector<8x128xi32>
    %2 = vector.broadcast %0 : vector<8x1xi32> to vector<8x128xi32>
    %3 = arith.cmpi eq, %1, %2 : vector<8x128xi32>
    %cst = arith.constant 1.000000e+00 : f32
    %cst_1 = arith.constant 0.000000e+00 : f32
    %4 = vector.broadcast %cst : f32 to vector<8x128xf32>
    %5 = vector.broadcast %cst_1 : f32 to vector<8x128xf32>
    %6 = arith.select %3, %4, %5 : vector<8x128xi1>, vector<8x128xf32>
    %c0_2 = arith.constant 0 : index
    %c0_3 = arith.constant 0 : index
    %7 = vector.load %arg1[%c0_2, %c0_3] : memref<128x128xf32, #tpu.memory_space<vmem>>, vector<128x128xf32>
    %cst_4 = arith.constant dense<0.000000e+00> : vector<8x128xf32>
    %8 = tpu.matmul %6, %7, %cst_4 {dimension_numbers = #tpu.dot_dimension_numbers<[1], [0], [0], [1], [0, 0, 1, 1], [], []>} : vector<8x128xf32>, vector<128x128xf32>, vector<8x128xf32> -> vector<8x128xf32>
    %9 = tpu.iota {dimensions = array<i32: 1>} : vector<8x128xi32>
    %c32_i32 = arith.constant 32 : i32
    %10 = vector.broadcast %c32_i32 : i32 to vector<8x128xi32>
    %11 = arith.cmpi slt, %9, %10 : vector<8x128xi32>
    %c0_5 = arith.constant 0 : index
    %c0_6 = arith.constant 0 : index
    %c0_7 = arith.constant 0 : index
    %12 = vector.load %arg2[%c0_5, %c0_6, %c0_7] : memref<2x8x128xf32, #tpu.memory_space<vmem>>, vector<1x8x128xf32>
    %13 = vector.shape_cast %12 : vector<1x8x128xf32> to vector<8x128xf32>
    %c0_8 = arith.constant 0 : index
    %c0_9 = arith.constant 0 : index
    %c0_10 = arith.constant 0 : index
    %14 = vector.load %arg3[%c0_8, %c0_9, %c0_10] : memref<2x8x128xf32, #tpu.memory_space<vmem>>, vector<1x8x128xf32>
    %15 = vector.shape_cast %14 : vector<1x8x128xf32> to vector<8x128xf32>
    %c32_i32_11 = arith.constant 32 : i32
    %16 = tpu.dynamic_rotate %13 by %c32_i32_11 dim 1 : vector<8x128xf32>, i32 -> vector<8x128xf32>
    %17 = arith.addf %8, %16 : vector<8x128xf32>
    %18 = arith.truncf %17 : vector<8x128xf32> to vector<8x128xbf16>
    %c0_12 = arith.constant 0 : index
    %c0_13 = arith.constant 0 : index
    %c0_14 = arith.constant 0 : index
    %19 = vector.load %arg4[%c0_12, %c0_13, %c0_14] : memref<2x128x128xbf16, #tpu.memory_space<vmem>>, vector<1x128x128xbf16>
    %20 = vector.shape_cast %19 : vector<1x128x128xbf16> to vector<128x128xbf16>
    %cst_15 = arith.constant dense<0.000000e+00> : vector<8x128xf32>
    %21 = tpu.matmul %18, %20, %cst_15 {dimension_numbers = #tpu.dot_dimension_numbers<[1], [0], [0], [1], [0, 0, 1, 1], [], []>} : vector<8x128xbf16>, vector<128x128xbf16>, vector<8x128xf32> -> vector<8x128xf32>
    %c0_16 = arith.constant 0 : index
    %c0_17 = arith.constant 0 : index
    %c0_18 = arith.constant 0 : index
    %22 = vector.load %arg5[%c0_16, %c0_17, %c0_18] : memref<2x1x128xf32, #tpu.memory_space<vmem>>, vector<1x1x128xf32>
    %23 = vector.shape_cast %22 : vector<1x1x128xf32> to vector<1x128xf32>
    %24 = vector.broadcast %23 : vector<1x128xf32> to vector<8x128xf32>
    %25 = arith.addf %21, %24 : vector<8x128xf32>
    %26 = arith.negf %25 : vector<8x128xf32>
    %27 = math.exp %26 : vector<8x128xf32>
    %cst_19 = arith.constant 1.000000e+00 : f32
    %28 = vector.broadcast %cst_19 : f32 to vector<8x128xf32>
    %29 = arith.addf %28, %27 : vector<8x128xf32>
    %30 = arith.divf %28, %29 : vector<8x128xf32>
    %31 = math.tanh %25 : vector<8x128xf32>
    %c96_i32 = arith.constant 96 : i32
    %32 = tpu.dynamic_rotate %30 by %c96_i32 dim 1 : vector<8x128xf32>, i32 -> vector<8x128xf32>
    %c64_i32 = arith.constant 64 : i32
    %33 = tpu.dynamic_rotate %31 by %c64_i32 dim 1 : vector<8x128xf32>, i32 -> vector<8x128xf32>
    %c32_i32_20 = arith.constant 32 : i32
    %34 = tpu.dynamic_rotate %30 by %c32_i32_20 dim 1 : vector<8x128xf32>, i32 -> vector<8x128xf32>
    %35 = arith.mulf %32, %15 : vector<8x128xf32>
    %36 = arith.mulf %30, %33 : vector<8x128xf32>
    %37 = arith.addf %35, %36 : vector<8x128xf32>
    %38 = math.tanh %37 : vector<8x128xf32>
    %39 = arith.mulf %34, %38 : vector<8x128xf32>
    %cst_21 = arith.constant 0.000000e+00 : f32
    %40 = vector.broadcast %cst_21 : f32 to vector<8x128xf32>
    %41 = arith.select %11, %37, %40 : vector<8x128xi1>, vector<8x128xf32>
    %cst_22 = arith.constant 0.000000e+00 : f32
    %42 = vector.broadcast %cst_22 : f32 to vector<8x128xf32>
    %43 = arith.select %11, %39, %42 : vector<8x128xi1>, vector<8x128xf32>
    %c0_23 = arith.constant 0 : index
    %c0_24 = arith.constant 0 : index
    %c0_25 = arith.constant 0 : index
    %44 = vector.load %arg8[%c0_23, %c0_24, %c0_25] : memref<2x8x128xf32, #tpu.memory_space<vmem>>, vector<1x8x128xf32>
    %45 = vector.shape_cast %44 : vector<1x8x128xf32> to vector<8x128xf32>
    %46 = vector.shape_cast %43 : vector<8x128xf32> to vector<1x8x128xf32>
    tpu.vector_store %arg8[%c0_23, %c0_24, %c0_25], %46 {strides = array<i32>} : memref<2x8x128xf32, #tpu.memory_space<vmem>>, vector<1x8x128xf32>,
    %c0_26 = arith.constant 0 : index
    %c0_27 = arith.constant 0 : index
    %c0_28 = arith.constant 0 : index
    %47 = vector.load %arg9[%c0_26, %c0_27, %c0_28] : memref<2x8x128xf32, #tpu.memory_space<vmem>>, vector<1x8x128xf32>
    %48 = vector.shape_cast %47 : vector<1x8x128xf32> to vector<8x128xf32>
    %49 = vector.shape_cast %41 : vector<8x128xf32> to vector<1x8x128xf32>
    tpu.vector_store %arg9[%c0_26, %c0_27, %c0_28], %49 {strides = array<i32>} : memref<2x8x128xf32, #tpu.memory_space<vmem>>, vector<1x8x128xf32>,
    %c1 = arith.constant 1 : index
    %c0_29 = arith.constant 0 : index
    %c0_30 = arith.constant 0 : index
    %50 = vector.load %arg2[%c1, %c0_29, %c0_30] : memref<2x8x128xf32, #tpu.memory_space<vmem>>, vector<1x8x128xf32>
    %51 = vector.shape_cast %50 : vector<1x8x128xf32> to vector<8x128xf32>
    %c1_31 = arith.constant 1 : index
    %c0_32 = arith.constant 0 : index
    %c0_33 = arith.constant 0 : index
    %52 = vector.load %arg3[%c1_31, %c0_32, %c0_33] : memref<2x8x128xf32, #tpu.memory_space<vmem>>, vector<1x8x128xf32>
    %53 = vector.shape_cast %52 : vector<1x8x128xf32> to vector<8x128xf32>
    %c32_i32_34 = arith.constant 32 : i32
    %54 = tpu.dynamic_rotate %51 by %c32_i32_34 dim 1 : vector<8x128xf32>, i32 -> vector<8x128xf32>
    %55 = arith.addf %43, %54 : vector<8x128xf32>
    %56 = arith.truncf %55 : vector<8x128xf32> to vector<8x128xbf16>
    %c1_35 = arith.constant 1 : index
    %c0_36 = arith.constant 0 : index
    %c0_37 = arith.constant 0 : index
    %57 = vector.load %arg4[%c1_35, %c0_36, %c0_37] : memref<2x128x128xbf16, #tpu.memory_space<vmem>>, vector<1x128x128xbf16>
    %58 = vector.shape_cast %57 : vector<1x128x128xbf16> to vector<128x128xbf16>
    %cst_38 = arith.constant dense<0.000000e+00> : vector<8x128xf32>
    %59 = tpu.matmul %56, %58, %cst_38 {dimension_numbers = #tpu.dot_dimension_numbers<[1], [0], [0], [1], [0, 0, 1, 1], [], []>} : vector<8x128xbf16>, vector<128x128xbf16>, vector<8x128xf32> -> vector<8x128xf32>
    %c1_39 = arith.constant 1 : index
    %c0_40 = arith.constant 0 : index
    %c0_41 = arith.constant 0 : index
    %60 = vector.load %arg5[%c1_39, %c0_40, %c0_41] : memref<2x1x128xf32, #tpu.memory_space<vmem>>, vector<1x1x128xf32>
    %61 = vector.shape_cast %60 : vector<1x1x128xf32> to vector<1x128xf32>
    %62 = vector.broadcast %61 : vector<1x128xf32> to vector<8x128xf32>
    %63 = arith.addf %59, %62 : vector<8x128xf32>
    %64 = arith.negf %63 : vector<8x128xf32>
    %65 = math.exp %64 : vector<8x128xf32>
    %cst_42 = arith.constant 1.000000e+00 : f32
    %66 = vector.broadcast %cst_42 : f32 to vector<8x128xf32>
    %67 = arith.addf %66, %65 : vector<8x128xf32>
    %68 = arith.divf %66, %67 : vector<8x128xf32>
    %69 = math.tanh %63 : vector<8x128xf32>
    %c96_i32_43 = arith.constant 96 : i32
    %70 = tpu.dynamic_rotate %68 by %c96_i32_43 dim 1 : vector<8x128xf32>, i32 -> vector<8x128xf32>
    %c64_i32_44 = arith.constant 64 : i32
    %71 = tpu.dynamic_rotate %69 by %c64_i32_44 dim 1 : vector<8x128xf32>, i32 -> vector<8x128xf32>
    %c32_i32_45 = arith.constant 32 : i32
    %72 = tpu.dynamic_rotate %68 by %c32_i32_45 dim 1 : vector<8x128xf32>, i32 -> vector<8x128xf32>
    %73 = arith.mulf %70, %53 : vector<8x128xf32>
    %74 = arith.mulf %68, %71 : vector<8x128xf32>
    %75 = arith.addf %73, %74 : vector<8x128xf32>
    %76 = math.tanh %75 : vector<8x128xf32>
    %77 = arith.mulf %72, %76 : vector<8x128xf32>
    %cst_46 = arith.constant 0.000000e+00 : f32
    %78 = vector.broadcast %cst_46 : f32 to vector<8x128xf32>
    %79 = arith.select %11, %75, %78 : vector<8x128xi1>, vector<8x128xf32>
    %cst_47 = arith.constant 0.000000e+00 : f32
    %80 = vector.broadcast %cst_47 : f32 to vector<8x128xf32>
    %81 = arith.select %11, %77, %80 : vector<8x128xi1>, vector<8x128xf32>
    %c1_48 = arith.constant 1 : index
    %c0_49 = arith.constant 0 : index
    %c0_50 = arith.constant 0 : index
    %82 = vector.load %arg8[%c1_48, %c0_49, %c0_50] : memref<2x8x128xf32, #tpu.memory_space<vmem>>, vector<1x8x128xf32>
    %83 = vector.shape_cast %82 : vector<1x8x128xf32> to vector<8x128xf32>
    %84 = vector.shape_cast %81 : vector<8x128xf32> to vector<1x8x128xf32>
    tpu.vector_store %arg8[%c1_48, %c0_49, %c0_50], %84 {strides = array<i32>} : memref<2x8x128xf32, #tpu.memory_space<vmem>>, vector<1x8x128xf32>,
    %c1_51 = arith.constant 1 : index
    %c0_52 = arith.constant 0 : index
    %c0_53 = arith.constant 0 : index
    %85 = vector.load %arg9[%c1_51, %c0_52, %c0_53] : memref<2x8x128xf32, #tpu.memory_space<vmem>>, vector<1x8x128xf32>
    %86 = vector.shape_cast %85 : vector<1x8x128xf32> to vector<8x128xf32>
    %87 = vector.shape_cast %79 : vector<8x128xf32> to vector<1x8x128xf32>
    tpu.vector_store %arg9[%c1_51, %c0_52, %c0_53], %87 {strides = array<i32>} : memref<2x8x128xf32, #tpu.memory_space<vmem>>, vector<1x8x128xf32>,
    %88 = arith.truncf %81 : vector<8x128xf32> to vector<8x128xbf16>
    %c0_54 = arith.constant 0 : index
    %c0_55 = arith.constant 0 : index
    %89 = vector.load %arg6[%c0_54, %c0_55] : memref<128x128xbf16, #tpu.memory_space<vmem>>, vector<128x128xbf16>
    %cst_56 = arith.constant dense<0.000000e+00> : vector<8x128xf32>
    %90 = tpu.matmul %88, %89, %cst_56 {dimension_numbers = #tpu.dot_dimension_numbers<[1], [0], [0], [1], [0, 0, 1, 1], [], []>} : vector<8x128xbf16>, vector<128x128xbf16>, vector<8x128xf32> -> vector<8x128xf32>
    %c0_57 = arith.constant 0 : index
    %c0_58 = arith.constant 0 : index
    %91 = vector.load %arg7[%c0_57, %c0_58] : memref<1x128xf32, #tpu.memory_space<vmem>>, vector<1x128xf32>
    %92 = vector.broadcast %91 : vector<1x128xf32> to vector<8x128xf32>
    %93 = arith.addf %90, %92 : vector<8x128xf32>
    %c0_59 = arith.constant 0 : index
    %c0_60 = arith.constant 0 : index
    %94 = vector.load %arg10[%c0_59, %c0_60] : memref<8x128xf32, #tpu.memory_space<vmem>>, vector<8x128xf32>
    tpu.vector_store %arg10[%c0_59, %c0_60], %93 {strides = array<i32>} : memref<8x128xf32, #tpu.memory_space<vmem>>, vector<8x128xf32>,
    return
  }
}

</mosaic_0001>

<llo_original>
// kernel: tpu_custom_call.1
$region0: #{tpu_custom_call.1}
  #allocation0 [shape = 'u32[]', space=smem, size = 0x4, offset = 0x4, fixed_abs, tag = 'smem constant byte address 0x4 - core index']
  #allocation1 [shape = 'u32[144,128]{1,0:T(1,128)}', space=vmem, size = 0x12000, scoped, tag = 'internal scratch']
  %s0 = inlined_call_operand.vmem [shape: s32[8,1], index: 0, kind: input, shape index: {}]
  %s1 = inlined_call_operand.hbm [shape: f32[128,128], index: 1, kind: input, shape index: {}]
  %s2 = inlined_call_operand.hbm [shape: f32[2,8,128], index: 2, kind: input, shape index: {}, may-alias: {2,8}]
  %s3 = inlined_call_operand.hbm [shape: f32[2,8,128], index: 3, kind: input, shape index: {}, may-alias: {3,9}]
  %s4 = inlined_call_operand.hbm [shape: bf16[2,128,128], index: 4, kind: input, shape index: {}]
  %s5 = inlined_call_operand.hbm [shape: f32[2,1,128], index: 5, kind: input, shape index: {}]
  %s6 = inlined_call_operand.vmem [shape: bf16[128,128], index: 6, kind: input, shape index: {}]
  %s7 = inlined_call_operand.hbm [shape: f32[1,128], index: 7, kind: input, shape index: {}]
  %s8 = inlined_call_operand.hbm [shape: f32[2,8,128], index: 8, kind: output, shape index: {0}, may-alias: {2,8}]
  %s9 = inlined_call_operand.hbm [shape: f32[2,8,128], index: 9, kind: output, shape index: {1}, may-alias: {3,9}]
  %s10 = inlined_call_operand.hbm [shape: f32[8,128], index: 10, kind: output, shape index: {2}]
  %11 = xla_tuple %s8, %s9, %s10
  %s12 = sld [smem:[#allocation0]]
  $region82: #{tpu_custom_call.1} parent=0
    _
  %s14 = ssub.s32 1, %s12
  %s15 = scalar_select 0, %s14, %s12
  $region1: #{tpu_custom_call.1} parent=0
    #allocation2 [shape = 'u8[65536]{0}', space=vmem, size = 0x10000, scoped, tag = 'input window, operand 1, single buffered']
    #allocation3 [shape = 's32[1]{0}', space=sflag, size = 0x4, scoped, tag = 'scoped memory for tpu_custom_call.1']
    #allocation4 [shape = 's32[1]{0}', space=sflag, size = 0x4, scoped, tag = 'scoped memory for tpu_custom_call.1']
    #allocation5 [shape = 'u8[8192]{0}', space=vmem, size = 0x2000, scoped, tag = 'input window, operand 2, single buffered']
    #allocation6 [shape = 's32[1]{0}', space=sflag, size = 0x4, scoped, tag = 'scoped memory for tpu_custom_call.1']
    #allocation7 [shape = 'u8[8192]{0}', space=vmem, size = 0x2000, scoped, tag = 'input window, operand 3, single buffered']
    #allocation8 [shape = 'u8[65536]{0}', space=vmem, size = 0x10000, scoped, tag = 'input window, operand 4, single buffered']
    #allocation9 [shape = 's32[1]{0}', space=sflag, size = 0x4, scoped, tag = 'scoped memory for tpu_custom_call.1']
    #allocation10 [shape = 'u8[1024]{0}', space=vmem, size = 0x400, scoped, tag = 'input window, operand 5, single buffered']
    #allocation11 [shape = 'u8[512]{0}', space=vmem, size = 0x400, scoped, tag = 'input window, operand 7, single buffered']
    #allocation12 [shape = 's32[1]{0}', space=sflag, size = 0x4, scoped, tag = 'scoped memory for tpu_custom_call.1']
    #allocation13 [shape = 'u8[8192]{0}', space=vmem, size = 0x2000, scoped, tag = 'output window, operand 0, single buffered']
    #allocation14 [shape = 'u8[8192]{0}', space=vmem, size = 0x2000, scoped, tag = 'output window, operand 1, single buffered']
    #allocation15 [shape = 's32[1]{0}', space=sflag, size = 0x4, scoped, tag = 'scoped memory for tpu_custom_call.1']
    #allocation16 [shape = 'u8[4096]{0}', space=vmem, size = 0x1000, scoped, tag = 'output window, operand 2, single buffered']
    %16 = vsyncpa [#allocation3], 0
    %17 = vsyncpa [#allocation6], 0
    %18 = vsyncpa [#allocation9], 0
    %19 = vsyncpa [#allocation12], 0
    %20 = vsyncpa [#allocation4], 0
    %21 = vsyncpa [#allocation15], 0
    // Predicated region
    $region2: #{tpu_custom_call.1} parent=1 // pred_check
      _
    $region3: #{tpu_custom_call.1} parent=1 // pred_check_branch
      %23 = sbr.rel (0) target = $region5
    $region4: #{tpu_custom_call.1} parent=1 // pred_region
      _
    $region5: #{tpu_custom_call.1} parent=1 // pred_fallthru
      _
    // Predicated region
    $region6: #{tpu_custom_call.1} parent=1 // pred_check
      _
    $region7: #{tpu_custom_call.1} parent=1 // pred_check_branch
      %25 = sbr.rel (0) target = $region9
    $region8: #{tpu_custom_call.1} parent=1 // pred_region
      %s27 = ssub.s32 2048, 2048
      %28 = vsyncadd [#allocation3], %s27
      %s29 = sshll.u32 [#allocation2], 4
      %s30 = int_to_ptr.vmem [resolvable:$true] %s29
      %35 = dma.hbm_to_vmem [thread:$0]  %s1, 2048, %s30, [#allocation3], 128, 128, 8
    $region9: #{tpu_custom_call.1} parent=1 // pred_fallthru
      _
    // Predicated region
    $region10: #{tpu_custom_call.1} parent=1 // pred_check
      _
    $region11: #{tpu_custom_call.1} parent=1 // pred_check_branch
      %37 = sbr.rel (0) target = $region13
    $region12: #{tpu_custom_call.1} parent=1 // pred_region
      %s39 = ssub.s32 256, 256
      %40 = vsyncadd [#allocation6], %s39
      %s41 = sshll.u32 [#allocation5], 4
      %s42 = int_to_ptr.vmem [resolvable:$true] %s41
      %47 = dma.hbm_to_vmem [thread:$0]  %s2, 256, %s42, [#allocation6], 128, 128, 8
    $region13: #{tpu_custom_call.1} parent=1 // pred_fallthru
      _
    // Predicated region
    $region14: #{tpu_custom_call.1} parent=1 // pred_check
      _
    $region15: #{tpu_custom_call.1} parent=1 // pred_check_branch
      %49 = sbr.rel (0) target = $region17
    $region16: #{tpu_custom_call.1} parent=1 // pred_region
      %s51 = ssub.s32 256, 256
      %52 = vsyncadd [#allocation6], %s51
      %s53 = sshll.u32 [#allocation7], 4
      %s54 = int_to_ptr.vmem [resolvable:$true] %s53
      %59 = dma.hbm_to_vmem [thread:$0]  %s3, 256, %s54, [#allocation6], 128, 128, 8
    $region17: #{tpu_custom_call.1} parent=1 // pred_fallthru
      _
    // Predicated region
    $region18: #{tpu_custom_call.1} parent=1 // pred_check
      _
    $region19: #{tpu_custom_call.1} parent=1 // pred_check_branch
      %61 = sbr.rel (0) target = $region21
    $region20: #{tpu_custom_call.1} parent=1 // pred_region
      %s63 = ssub.s32 2048, 2048
      %64 = vsyncadd [#allocation9], %s63
      %s65 = sshll.u32 [#allocation8], 4
      %s66 = int_to_ptr.vmem [resolvable:$true] %s65
      %71 = dma.hbm_to_vmem [thread:$0]  %s4, 2048, %s66, [#allocation9], 64, 64, 4
    $region21: #{tpu_custom_call.1} parent=1 // pred_fallthru
      _
    // Predicated region
    $region22: #{tpu_custom_call.1} parent=1 // pred_check
      _
    $region23: #{tpu_custom_call.1} parent=1 // pred_check_branch
      %73 = sbr.rel (0) target = $region25
    $region24: #{tpu_custom_call.1} parent=1 // pred_region
      %s75 = ssub.s32 32, 32
      %76 = vsyncadd [#allocation9], %s75
      %s77 = sshll.u32 [#allocation10], 4
      %s78 = int_to_ptr.vmem [resolvable:$true] %s77
      %83 = dma.hbm_to_vmem [thread:$0]  %s5, 32, %s78, [#allocation9], 16, 16, 1
    $region25: #{tpu_custom_call.1} parent=1 // pred_fallthru
      _
    // Predicated region
    $region26: #{tpu_custom_call.1} parent=1 // pred_check
      _
    $region27: #{tpu_custom_call.1} parent=1 // pred_check_branch
      %85 = sbr.rel (0) target = $region29
    $region28: #{tpu_custom_call.1} parent=1 // pred_region
      _
    $region29: #{tpu_custom_call.1} parent=1 // pred_fallthru
      _
    // Predicated region
    $region30: #{tpu_custom_call.1} parent=1 // pred_check
      _
    $region31: #{tpu_custom_call.1} parent=1 // pred_check_branch
      %87 = sbr.rel (0) target = $region33
    $region32: #{tpu_custom_call.1} parent=1 // pred_region
      %s89 = ssub.s32 16, 16
      %90 = vsyncadd [#allocation12], %s89
      %s92 = sshll.u32 [#allocation11], 4
      %s93 = int_to_ptr.vmem [resolvable:$true] %s92
      %95 = dma.hbm_to_vmem [thread:$0]  %s7, 16, %s93, [#allocation12]
    $region33: #{tpu_custom_call.1} parent=1 // pred_fallthru
      _
    // Predicated region
    $region34: #{tpu_custom_call.1} parent=1 // pred_check
      _
    $region35: #{tpu_custom_call.1} parent=1 // pred_check_branch
      %97 = sbr.rel (0) target = $region37
    $region36: #{tpu_custom_call.1} parent=1 // pred_region
      %98 = dma.done [#allocation3], 2048
    $region37: #{tpu_custom_call.1} parent=1 // pred_fallthru
      _
    // Predicated region
    $region38: #{tpu_custom_call.1} parent=1 // pred_check
      _
    $region39: #{tpu_custom_call.1} parent=1 // pred_check_branch
      %100 = sbr.rel (0) target = $region41
    $region40: #{tpu_custom_call.1} parent=1 // pred_region
      %101 = dma.done [#allocation6], 256
    $region41: #{tpu_custom_call.1} parent=1 // pred_fallthru
      _
    // Predicated region
    $region42: #{tpu_custom_call.1} parent=1 // pred_check
      _
    $region43: #{tpu_custom_call.1} parent=1 // pred_check_branch
      %103 = sbr.rel (0) target = $region45
    $region44: #{tpu_custom_call.1} parent=1 // pred_region
      %104 = dma.done [#allocation6], 256
    $region45: #{tpu_custom_call.1} parent=1 // pred_fallthru
      _
    // Predicated region
    $region46: #{tpu_custom_call.1} parent=1 // pred_check
      _
    $region47: #{tpu_custom_call.1} parent=1 // pred_check_branch
      %106 = sbr.rel (0) target = $region49
    $region48: #{tpu_custom_call.1} parent=1 // pred_region
      %107 = dma.done [#allocation9], 2048
    $region49: #{tpu_custom_call.1} parent=1 // pred_fallthru
      _
    // Predicated region
    $region50: #{tpu_custom_call.1} parent=1 // pred_check
      _
    $region51: #{tpu_custom_call.1} parent=1 // pred_check_branch
      %109 = sbr.rel (0) target = $region53
    $region52: #{tpu_custom_call.1} parent=1 // pred_region
      %110 = dma.done [#allocation9], 32
    $region53: #{tpu_custom_call.1} parent=1 // pred_fallthru
      _
    // Predicated region
    $region54: #{tpu_custom_call.1} parent=1 // pred_check
      _
    $region55: #{tpu_custom_call.1} parent=1 // pred_check_branch
      %112 = sbr.rel (0) target = $region57
    $region56: #{tpu_custom_call.1} parent=1 // pred_region
      %113 = dma.done [#allocation12], 16
    $region57: #{tpu_custom_call.1} parent=1 // pred_fallthru
      _
    %v115 = vld [vmem:[%s0] sm:$0xff]
    %v116 = vlaneseq
    %v117 = vand.u32 %v116, 127
    %118 = vset.pattern.permute.xlu0 0
    %119 = vperm.xlu0 %118, %v115
    %v120 = vpop.permute.xlu0 %119
    %vm121 = vcmp.eq.s32.totalorder %v117, %v120
    %v122 = vsel %vm121, 1.0, 0.0
    %v123 = vld [vmem:[#allocation2] sm:$0xff]
    %v124 = vld [vmem:[#allocation2 + $0x8] sm:$0xff]
    %v125 = vld [vmem:[#allocation2 + $0x10] sm:$0xff]
    %v126 = vld [vmem:[#allocation2 + $0x18] sm:$0xff]
    %v127 = vld [vmem:[#allocation2 + $0x20] sm:$0xff]
    %v128 = vld [vmem:[#allocation2 + $0x28] sm:$0xff]
    %v129 = vld [vmem:[#allocation2 + $0x30] sm:$0xff]
    %v130 = vld [vmem:[#allocation2 + $0x38] sm:$0xff]
    %v131 = vld [vmem:[#allocation2 + $0x40] sm:$0xff]
    %v132 = vld [vmem:[#allocation2 + $0x48] sm:$0xff]
    %v133 = vld [vmem:[#allocation2 + $0x50] sm:$0xff]
    %v134 = vld [vmem:[#allocation2 + $0x58] sm:$0xff]
    %v135 = vld [vmem:[#allocation2 + $0x60] sm:$0xff]
    %v136 = vld [vmem:[#allocation2 + $0x68] sm:$0xff]
    %v137 = vld [vmem:[#allocation2 + $0x70] sm:$0xff]
    %v138 = vld [vmem:[#allocation2 + $0x78] sm:$0xff]
    %vm139 = vcmp.lt.s32.totalorder %v117, 32
    %v140 = vld [vmem:[#allocation5] sm:$0xff]
    %v141 = vld [vmem:[#allocation7] sm:$0xff]
    %142 = vrot.lane.b32.xlu0 %v140, 32
    %v143 = vpop.permute.xlu0 %142
    %144 = vmatprep.subr.mxu0 0.0
    %145 = vmatpush1.msra.mxu0 %v123
    %146 = vmatprep.subr.mxu0 0.0
    %147 = vmatpush1.msra.mxu0 %v124
    %148 = vmatprep.subr.mxu0 0.0
    %149 = vmatpush1.msra.mxu0 %v125
    %150 = vmatprep.subr.mxu0 0.0
    %151 = vmatpush1.msra.mxu0 %v126
    %152 = vmatprep.subr.mxu0 0.0
    %153 = vmatpush1.msra.mxu0 %v127
    %154 = vmatprep.subr.mxu0 0.0
    %155 = vmatpush1.msra.mxu0 %v128
    %156 = vmatprep.subr.mxu0 0.0
    %157 = vmatpush1.msra.mxu0 %v129
    %158 = vmatprep.subr.mxu0 0.0
    %159 = vmatpush1.msra.mxu0 %v130
    %160 = vmatprep.subr.mxu0 0.0
    %161 = vmatpush1.msra.mxu0 %v131
    %162 = vmatprep.subr.mxu0 0.0
    %163 = vmatpush1.msra.mxu0 %v132
    %164 = vmatprep.subr.mxu0 0.0
    %165 = vmatpush1.msra.mxu0 %v133
    %166 = vmatprep.subr.mxu0 0.0
    %167 = vmatpush1.msra.mxu0 %v134
    %168 = vmatprep.subr.mxu0 0.0
    %169 = vmatpush1.msra.mxu0 %v135
    %170 = vmatprep.subr.mxu0 0.0
    %171 = vmatpush1.msra.mxu0 %v136
    %172 = vmatprep.subr.mxu0 0.0
    %173 = vmatpush1.msra.mxu0 %v137
    %174 = vmatprep.subr.mxu0 0.0
    %175 = vmatpush1.msra.mxu0 %v138
    %176 = vmatprep.subr.mxu0 0.0
    %177 = vmatpush1.msra.mxu0 0.0
    %178 = vmatprep.subr.mxu0 0.0
    %179 = vmatpush1.msra.mxu0 0.0
    %180 = vmatprep.subr.mxu0 0.0
    %181 = vmatpush1.msra.mxu0 0.0
    %182 = vmatprep.subr.mxu0 0.0
    %183 = vmatpush1.msra.mxu0 0.0
    %184 = vmatprep.subr.mxu0 0.0
    %185 = vmatpush1.msra.mxu0 0.0
    %186 = vmatprep.subr.mxu0 0.0
    %187 = vmatpush1.msra.mxu0 0.0
    %188 = vmatprep.subr.mxu0 0.0
    %189 = vmatpush1.msra.mxu0 0.0
    %190 = vmatprep.subr.mxu0 0.0
    %191 = vmatpush1.msra.mxu0 0.0
    %192 = vmatprep.subr.mxu0 0.0
    %193 = vmatpush1.msra.mxu0 0.0
    %194 = vmatprep.subr.mxu0 0.0
    %195 = vmatpush1.msra.mxu0 0.0
    %196 = vmatprep.subr.mxu0 0.0
    %197 = vmatpush1.msra.mxu0 0.0
    %198 = vmatprep.subr.mxu0 0.0
    %199 = vmatpush1.msra.mxu0 0.0
    %200 = vmatprep.subr.mxu0 0.0
    %201 = vmatpush1.msra.mxu0 0.0
    %202 = vmatprep.subr.mxu0 0.0
    %203 = vmatpush1.msra.mxu0 0.0
    %204 = vmatprep.subr.mxu0 0.0
    %205 = vmatpush1.msra.mxu0 0.0
    %206 = vmatprep.subr.mxu0 0.0
    %207 = vmatpush1.msra.mxu0 0.0
    %208 = vmatprep.mubr.f32.mxu0 0.0
    %209 = vmatmul.mubr.f32.gmra.mrb[0].mxu0 %v122
    %v210 = vpop.f32.mrb[0].mxu0
    %v211 = vadd.f32 %v143, %v210
    %v212 = vpop.f32.mrb[0].mxu0
    %213 = vdwg.mxu0
    %v214 = vpack.c.bf16 %v211, %v211
    %v215 = vld [vmem:[#allocation8] sm:$0xf]
    %v216 = vld [vmem:[#allocation8 + $0x4] sm:$0xf]
    %v217 = vld [vmem:[#allocation8 + $0x8] sm:$0xf]
    %v218 = vld [vmem:[#allocation8 + $0xc] sm:$0xf]
    %v219 = vld [vmem:[#allocation8 + $0x10] sm:$0xf]
    %v220 = vld [vmem:[#allocation8 + $0x14] sm:$0xf]
    %v221 = vld [vmem:[#allocation8 + $0x18] sm:$0xf]
    %v222 = vld [vmem:[#allocation8 + $0x1c] sm:$0xf]
    %v223 = vld [vmem:[#allocation8 + $0x20] sm:$0xf]
    %v224 = vld [vmem:[#allocation8 + $0x24] sm:$0xf]
    %v225 = vld [vmem:[#allocation8 + $0x28] sm:$0xf]
    %v226 = vld [vmem:[#allocation8 + $0x2c] sm:$0xf]
    %v227 = vld [vmem:[#allocation8 + $0x30] sm:$0xf]
    %v228 = vld [vmem:[#allocation8 + $0x34] sm:$0xf]
    %v229 = vld [vmem:[#allocation8 + $0x38] sm:$0xf]
    %v230 = vld [vmem:[#allocation8 + $0x3c] sm:$0xf]
    %v231 = vld [vmem:[#allocation10] sm:$0x1]
    %v233 = vlaneseq
    %v234 = vshrl.u32 %v233, 7
    %v235 = vsub.s32 0, %v234
    %v236 = vrot.slane %v231, %v235
    %v254 = vunpack.c.l.b16 %v215
    %v255 = vunpack.c.l.b16 %v216
    %v256 = vunpack.c.l.b16 %v217
    %v257 = vunpack.c.l.b16 %v218
    %v258 = vunpack.c.l.b16 %v219
    %v259 = vunpack.c.l.b16 %v220
    %v260 = vunpack.c.l.b16 %v221
    %v261 = vunpack.c.l.b16 %v222
    %v262 = vunpack.c.l.b16 %v223
    %v263 = vunpack.c.l.b16 %v224
    %v264 = vunpack.c.l.b16 %v225
    %v265 = vunpack.c.l.b16 %v226
    %v266 = vunpack.c.l.b16 %v227
    %v267 = vunpack.c.l.b16 %v228
    %v268 = vunpack.c.l.b16 %v229
    %v269 = vunpack.c.l.b16 %v230
    %v270 = vpack.c.b16 %v255, %v254
    %v271 = vpack.c.b16 %v257, %v256
    %v272 = vpack.c.b16 %v259, %v258
    %v273 = vpack.c.b16 %v261, %v260
    %v274 = vpack.c.b16 %v263, %v262
    %v275 = vpack.c.b16 %v265, %v264
    %v276 = vpack.c.b16 %v267, %v266
    %v277 = vpack.c.b16 %v269, %v268
    %286 = vmatprep.subr.bf16.mxu0 0
    %287 = vmatpush1.bf16.msra.mxu0 %v270
    %288 = vmatprep.subr.bf16.mxu0 0
    %289 = vmatpush1.bf16.msra.mxu0 %v271
    %290 = vmatprep.subr.bf16.mxu0 0
    %291 = vmatpush1.bf16.msra.mxu0 %v272
    %292 = vmatprep.subr.bf16.mxu0 0
    %293 = vmatpush1.bf16.msra.mxu0 %v273
    %294 = vmatprep.subr.bf16.mxu0 0
    %295 = vmatpush1.bf16.msra.mxu0 %v274
    %296 = vmatprep.subr.bf16.mxu0 0
    %297 = vmatpush1.bf16.msra.mxu0 %v275
    %298 = vmatprep.subr.bf16.mxu0 0
    %299 = vmatpush1.bf16.msra.mxu0 %v276
    %300 = vmatprep.subr.bf16.mxu0 0
    %301 = vmatpush1.bf16.msra.mxu0 %v277
    %302 = vmatprep.subr.bf16.mxu0 0
    %303 = vmatpush1.bf16.msra.mxu0 0
    %304 = vmatprep.subr.bf16.mxu0 0
    %305 = vmatpush1.bf16.msra.mxu0 0
    %306 = vmatprep.subr.bf16.mxu0 0
    %307 = vmatpush1.bf16.msra.mxu0 0
    %308 = vmatprep.subr.bf16.mxu0 0
    %309 = vmatpush1.bf16.msra.mxu0 0
    %310 = vmatprep.subr.bf16.mxu0 0
    %311 = vmatpush1.bf16.msra.mxu0 0
    %312 = vmatprep.subr.bf16.mxu0 0
    %313 = vmatpush1.bf16.msra.mxu0 0
    %314 = vmatprep.subr.bf16.mxu0 0
    %315 = vmatpush1.bf16.msra.mxu0 0
    %316 = vmatprep.subr.bf16.mxu0 0
    %317 = vmatpush1.bf16.msra.mxu0 0
    %318 = vmatprep.mubr.bf16.mxu0 0
    %319 = vmatmul.mubr.bf16.gmra.mrb[0].mxu0 %v214
    %v320 = vpop.f32.mrb[0].mxu0
    %v321 = vadd.f32 %v236, %v320
    %v322 = vpop.f32.mrb[0].mxu0
    %v323 = vpop.f32.mrb[0].mxu0
    %v324 = vpop.f32.mrb[0].mxu0
    %325 = vdwg.mxu0
    %v326 = vxor.u32 %v321, 2147483648
    %v327 = vmul.f32 %v326, 1.442695
    %v328 = vpow.pop %v327
    %v329 = vadd.f32 %v328, 1.0
    %v330 = vrcp.pop %v329
    %v331 = vmul.f32 1.0, %v330
    %v332 = vtanh.pop %v321
    %333 = vrot.lane.b32.xlu0 %v331, 96
    %v334 = vpop.permute.xlu0 %333
    %335 = vrot.lane.b32.xlu0 %v332, 64
    %v336 = vpop.permute.xlu0 %335
    %337 = vrot.lane.b32.xlu0 %v331, 32
    %v338 = vpop.permute.xlu0 %337
    %v339 = vmul.f32 %v334, %v141
    %v340 = vmul.f32 %v331, %v336
    %v341 = vadd.f32 %v339, %v340
    %v342 = vtanh.pop %v341
    %v343 = vmul.f32 %v338, %v342
    %v344 = vsel %vm139, %v341, 0.0
    %v345 = vsel %vm139, %v343, 0.0
    %346 = vst [vmem:[#allocation13] sm:$0xff] %v345
    %347 = vst [vmem:[#allocation14] sm:$0xff] %v344
    %s348 = scalar_lea.vmem [#allocation5], 8
    %v349 = vld [vmem:[%s348] sm:$0xff]
    %s350 = scalar_lea.vmem [#allocation7], 8
    %v351 = vld [vmem:[%s350] sm:$0xff]
    %352 = vrot.lane.b32.xlu0 %v349, 32
    %v353 = vpop.permute.xlu0 %352
    %v354 = vadd.f32 %v345, %v353
    %v355 = vpack.c.bf16 %v354, %v354
    %s356 = scalar_lea.vmem [#allocation8], 64
    %v357 = vld [vmem:[%s356] sm:$0xf]
    %v358 = vld [vmem:[%s356 + $0x4] sm:$0xf]
    %v359 = vld [vmem:[%s356 + $0x8] sm:$0xf]
    %v360 = vld [vmem:[%s356 + $0xc] sm:$0xf]
    %v361 = vld [vmem:[%s356 + $0x10] sm:$0xf]
    %v362 = vld [vmem:[%s356 + $0x14] sm:$0xf]
    %v363 = vld [vmem:[%s356 + $0x18] sm:$0xf]
    %v364 = vld [vmem:[%s356 + $0x1c] sm:$0xf]
    %v365 = vld [vmem:[%s356 + $0x20] sm:$0xf]
    %v366 = vld [vmem:[%s356 + $0x24] sm:$0xf]
    %v367 = vld [vmem:[%s356 + $0x28] sm:$0xf]
    %v368 = vld [vmem:[%s356 + $0x2c] sm:$0xf]
    %v369 = vld [vmem:[%s356 + $0x30] sm:$0xf]
    %v370 = vld [vmem:[%s356 + $0x34] sm:$0xf]
    %v371 = vld [vmem:[%s356 + $0x38] sm:$0xf]
    %v372 = vld [vmem:[%s356 + $0x3c] sm:$0xf]
    %s373 = scalar_lea.vmem [#allocation10], 1
    %v374 = vld [vmem:[%s373] sm:$0x1]
    %v376 = vlaneseq
    %v377 = vshrl.u32 %v376, 7
    %v378 = vsub.s32 0, %v377
    %v379 = vrot.slane %v374, %v378
    %v397 = vunpack.c.l.b16 %v357
    %v398 = vunpack.c.l.b16 %v358
    %v399 = vunpack.c.l.b16 %v359
    %v400 = vunpack.c.l.b16 %v360
    %v401 = vunpack.c.l.b16 %v361
    %v402 = vunpack.c.l.b16 %v362
    %v403 = vunpack.c.l.b16 %v363
    %v404 = vunpack.c.l.b16 %v364
    %v405 = vunpack.c.l.b16 %v365
    %v406 = vunpack.c.l.b16 %v366
    %v407 = vunpack.c.l.b16 %v367
    %v408 = vunpack.c.l.b16 %v368
    %v409 = vunpack.c.l.b16 %v369
    %v410 = vunpack.c.l.b16 %v370
    %v411 = vunpack.c.l.b16 %v371
    %v412 = vunpack.c.l.b16 %v372
    %v413 = vpack.c.b16 %v398, %v397
    %v414 = vpack.c.b16 %v400, %v399
    %v415 = vpack.c.b16 %v402, %v401
    %v416 = vpack.c.b16 %v404, %v403
    %v417 = vpack.c.b16 %v406, %v405
    %v418 = vpack.c.b16 %v408, %v407
    %v419 = vpack.c.b16 %v410, %v409
    %v420 = vpack.c.b16 %v412, %v411
    %429 = vmatprep.subr.bf16.mxu0 0
    %430 = vmatpush1.bf16.msra.mxu0 %v413
    %431 = vmatprep.subr.bf16.mxu0 0
    %432 = vmatpush1.bf16.msra.mxu0 %v414
    %433 = vmatprep.subr.bf16.mxu0 0
    %434 = vmatpush1.bf16.msra.mxu0 %v415
    %435 = vmatprep.subr.bf16.mxu0 0
    %436 = vmatpush1.bf16.msra.mxu0 %v416
    %437 = vmatprep.subr.bf16.mxu0 0
    %438 = vmatpush1.bf16.msra.mxu0 %v417
    %439 = vmatprep.subr.bf16.mxu0 0
    %440 = vmatpush1.bf16.msra.mxu0 %v418
    %441 = vmatprep.subr.bf16.mxu0 0
    %442 = vmatpush1.bf16.msra.mxu0 %v419
    %443 = vmatprep.subr.bf16.mxu0 0
    %444 = vmatpush1.bf16.msra.mxu0 %v420
    %445 = vmatprep.subr.bf16.mxu0 0
    %446 = vmatpush1.bf16.msra.mxu0 0
    %447 = vmatprep.subr.bf16.mxu0 0
    %448 = vmatpush1.bf16.msra.mxu0 0
    %449 = vmatprep.subr.bf16.mxu0 0
    %450 = vmatpush1.bf16.msra.mxu0 0
    %451 = vmatprep.subr.bf16.mxu0 0
    %452 = vmatpush1.bf16.msra.mxu0 0
    %453 = vmatprep.subr.bf16.mxu0 0
    %454 = vmatpush1.bf16.msra.mxu0 0
    %455 = vmatprep.subr.bf16.mxu0 0
    %456 = vmatpush1.bf16.msra.mxu0 0
    %457 = vmatprep.subr.bf16.mxu0 0
    %458 = vmatpush1.bf16.msra.mxu0 0
    %459 = vmatprep.subr.bf16.mxu0 0
    %460 = vmatpush1.bf16.msra.mxu0 0
    %461 = vmatprep.mubr.bf16.mxu0 0
    %462 = vmatmul.mubr.bf16.gmra.mrb[0].mxu0 %v355
    %v463 = vpop.f32.mrb[0].mxu0
    %v464 = vadd.f32 %v379, %v463
    %v465 = vpop.f32.mrb[0].mxu0
    %v466 = vpop.f32.mrb[0].mxu0
    %v467 = vpop.f32.mrb[0].mxu0
    %468 = vdwg.mxu0
    %v469 = vxor.u32 %v464, 2147483648
    %v470 = vmul.f32 %v469, 1.442695
    %v471 = vpow.pop %v470
    %v472 = vadd.f32 %v471, 1.0
    %v473 = vrcp.pop %v472
    %v474 = vmul.f32 1.0, %v473
    %v475 = vtanh.pop %v464
    %476 = vrot.lane.b32.xlu0 %v474, 96
    %v477 = vpop.permute.xlu0 %476
    %478 = vrot.lane.b32.xlu0 %v475, 64
    %v479 = vpop.permute.xlu0 %478
    %480 = vrot.lane.b32.xlu0 %v474, 32
    %v481 = vpop.permute.xlu0 %480
    %v482 = vmul.f32 %v477, %v351
    %v483 = vmul.f32 %v474, %v479
    %v484 = vadd.f32 %v482, %v483
    %v485 = vtanh.pop %v484
    %v486 = vmul.f32 %v481, %v485
    %v487 = vsel %vm139, %v484, 0.0
    %v488 = vsel %vm139, %v486, 0.0
    %s489 = scalar_lea.vmem [#allocation13], 8
    %490 = vst [vmem:[%s489] sm:$0xff] %v488
    %s491 = scalar_lea.vmem [#allocation14], 8
    %492 = vst [vmem:[%s491] sm:$0xff] %v487
    %v493 = vpack.c.bf16 %v488, %v488
    %v494 = vld [vmem:[%s6] sm:$0xf]
    %v495 = vld [vmem:[%s6 + $0x4] sm:$0xf]
    %v496 = vld [vmem:[%s6 + $0x8] sm:$0xf]
    %v497 = vld [vmem:[%s6 + $0xc] sm:$0xf]
    %v498 = vld [vmem:[%s6 + $0x10] sm:$0xf]
    %v499 = vld [vmem:[%s6 + $0x14] sm:$0xf]
    %v500 = vld [vmem:[%s6 + $0x18] sm:$0xf]
    %v501 = vld [vmem:[%s6 + $0x1c] sm:$0xf]
    %v502 = vld [vmem:[%s6 + $0x20] sm:$0xf]
    %v503 = vld [vmem:[%s6 + $0x24] sm:$0xf]
    %v504 = vld [vmem:[%s6 + $0x28] sm:$0xf]
    %v505 = vld [vmem:[%s6 + $0x2c] sm:$0xf]
    %v506 = vld [vmem:[%s6 + $0x30] sm:$0xf]
    %v507 = vld [vmem:[%s6 + $0x34] sm:$0xf]
    %v508 = vld [vmem:[%s6 + $0x38] sm:$0xf]
    %v509 = vld [vmem:[%s6 + $0x3c] sm:$0xf]
    %v510 = vld [vmem:[#allocation11] sm:$0x1]
    %v512 = vlaneseq
    %v513 = vshrl.u32 %v512, 7
    %v514 = vsub.s32 0, %v513
    %v515 = vrot.slane %v510, %v514
    %v533 = vunpack.c.l.b16 %v494
    %v534 = vunpack.c.l.b16 %v495
    %v535 = vunpack.c.l.b16 %v496
    %v536 = vunpack.c.l.b16 %v497
    %v537 = vunpack.c.l.b16 %v498
    %v538 = vunpack.c.l.b16 %v499
    %v539 = vunpack.c.l.b16 %v500
    %v540 = vunpack.c.l.b16 %v501
    %v541 = vunpack.c.l.b16 %v502
    %v542 = vunpack.c.l.b16 %v503
    %v543 = vunpack.c.l.b16 %v504
    %v544 = vunpack.c.l.b16 %v505
    %v545 = vunpack.c.l.b16 %v506
    %v546 = vunpack.c.l.b16 %v507
    %v547 = vunpack.c.l.b16 %v508
    %v548 = vunpack.c.l.b16 %v509
    %v549 = vpack.c.b16 %v534, %v533
    %v550 = vpack.c.b16 %v536, %v535
    %v551 = vpack.c.b16 %v538, %v537
    %v552 = vpack.c.b16 %v540, %v539
    %v553 = vpack.c.b16 %v542, %v541
    %v554 = vpack.c.b16 %v544, %v543
    %v555 = vpack.c.b16 %v546, %v545
    %v556 = vpack.c.b16 %v548, %v547
    %565 = vmatprep.subr.bf16.mxu0 0
    %566 = vmatpush1.bf16.msra.mxu0 %v549
    %567 = vmatprep.subr.bf16.mxu0 0
    %568 = vmatpush1.bf16.msra.mxu0 %v550
    %569 = vmatprep.subr.bf16.mxu0 0
    %570 = vmatpush1.bf16.msra.mxu0 %v551
    %571 = vmatprep.subr.bf16.mxu0 0
    %572 = vmatpush1.bf16.msra.mxu0 %v552
    %573 = vmatprep.subr.bf16.mxu0 0
    %574 = vmatpush1.bf16.msra.mxu0 %v553
    %575 = vmatprep.subr.bf16.mxu0 0
    %576 = vmatpush1.bf16.msra.mxu0 %v554
    %577 = vmatprep.subr.bf16.mxu0 0
    %578 = vmatpush1.bf16.msra.mxu0 %v555
    %579 = vmatprep.subr.bf16.mxu0 0
    %580 = vmatpush1.bf16.msra.mxu0 %v556
    %581 = vmatprep.subr.bf16.mxu0 0
    %582 = vmatpush1.bf16.msra.mxu0 0
    %583 = vmatprep.subr.bf16.mxu0 0
    %584 = vmatpush1.bf16.msra.mxu0 0
    %585 = vmatprep.subr.bf16.mxu0 0
    %586 = vmatpush1.bf16.msra.mxu0 0
    %587 = vmatprep.subr.bf16.mxu0 0
    %588 = vmatpush1.bf16.msra.mxu0 0
    %589 = vmatprep.subr.bf16.mxu0 0
    %590 = vmatpush1.bf16.msra.mxu0 0
    %591 = vmatprep.subr.bf16.mxu0 0
    %592 = vmatpush1.bf16.msra.mxu0 0
    %593 = vmatprep.subr.bf16.mxu0 0
    %594 = vmatpush1.bf16.msra.mxu0 0
    %595 = vmatprep.subr.bf16.mxu0 0
    %596 = vmatpush1.bf16.msra.mxu0 0
    %597 = vmatprep.mubr.bf16.mxu0 0
    %598 = vmatmul.mubr.bf16.gmra.mrb[0].mxu0 %v493
    %v599 = vpop.f32.mrb[0].mxu0
    %v600 = vadd.f32 %v515, %v599
    %v601 = vpop.f32.mrb[0].mxu0
    %v602 = vpop.f32.mrb[0].mxu0
    %v603 = vpop.f32.mrb[0].mxu0
    %604 = vdwg.mxu0
    %605 = vst [vmem:[#allocation16] sm:$0xff] %v600
    // Predicated region
    $region58: #{tpu_custom_call.1} parent=1 // pred_check
      _
    $region59: #{tpu_custom_call.1} parent=1 // pred_check_branch
      %607 = sbr.rel (0) target = $region61
    $region60: #{tpu_custom_call.1} parent=1 // pred_region
      %s609 = ssub.s32 256, 256
      %610 = vsyncadd [#allocation4], %s609
      %s611 = sshll.u32 [#allocation13], 4
      %s612 = int_to_ptr.vmem [resolvable:$true] %s611
      %617 = dma.vmem_to_hbm [thread:$0]  %s612, 256, %s8, [#allocation4], 128, 128, 8
    $region61: #{tpu_custom_call.1} parent=1 // pred_fallthru
      _
    // Predicated region
    $region62: #{tpu_custom_call.1} parent=1 // pred_check
      _
    $region63: #{tpu_custom_call.1} parent=1 // pred_check_branch
      %619 = sbr.rel (0) target = $region65
    $region64: #{tpu_custom_call.1} parent=1 // pred_region
      %s621 = ssub.s32 256, 256
      %622 = vsyncadd [#allocation15], %s621
      %s623 = sshll.u32 [#allocation14], 4
      %s624 = int_to_ptr.vmem [resolvable:$true] %s623
      %629 = dma.vmem_to_hbm [thread:$0]  %s624, 256, %s9, [#allocation15], 128, 128, 8
    $region65: #{tpu_custom_call.1} parent=1 // pred_fallthru
      _
    // Predicated region
    $region66: #{tpu_custom_call.1} parent=1 // pred_check
      _
    $region67: #{tpu_custom_call.1} parent=1 // pred_check_branch
      %631 = sbr.rel (0) target = $region69
    $region68: #{tpu_custom_call.1} parent=1 // pred_region
      %s633 = ssub.s32 128, 128
      %634 = vsyncadd [#allocation15], %s633
      %s636 = sshll.u32 [#allocation16], 4
      %s637 = int_to_ptr.vmem [resolvable:$true] %s636
      %639 = dma.vmem_to_hbm [thread:$0]  %s637, 128, %s10, [#allocation15]
    $region69: #{tpu_custom_call.1} parent=1 // pred_fallthru
      _
    // Predicated region
    $region70: #{tpu_custom_call.1} parent=1 // pred_check
      _
    $region71: #{tpu_custom_call.1} parent=1 // pred_check_branch
      %641 = sbr.rel (0) target = $region73
    $region72: #{tpu_custom_call.1} parent=1 // pred_region
      %642 = dma.done [#allocation4], 256
    $region73: #{tpu_custom_call.1} parent=1 // pred_fallthru
      _
    // Predicated region
    $region74: #{tpu_custom_call.1} parent=1 // pred_check
      _
    $region75: #{tpu_custom_call.1} parent=1 // pred_check_branch
      %644 = sbr.rel (0) target = $region77
    $region76: #{tpu_custom_call.1} parent=1 // pred_region
      %645 = dma.done [#allocation15], 256
    $region77: #{tpu_custom_call.1} parent=1 // pred_fallthru
      _
    // Predicated region
    $region78: #{tpu_custom_call.1} parent=1 // pred_check
      _
    $region79: #{tpu_custom_call.1} parent=1 // pred_check_branch
      %647 = sbr.rel (0) target = $region81
    $region80: #{tpu_custom_call.1} parent=1 // pred_region
      %648 = dma.done [#allocation15], 128
    $region81: #{tpu_custom_call.1} parent=1 // pred_fallthru
      _
    %649 = vsyncpa [#allocation3], 1
    %650 = vsyncpa [#allocation6], 1
    %651 = vsyncpa [#allocation9], 1
    %652 = vsyncpa [#allocation12], 1
    %653 = vsyncpa [#allocation4], 1
    %654 = vsyncpa [#allocation15], 1

</llo_original>
